<compile_context>
chip_gen: v5e
topology: v5e:2x2
jax: 0.10.0
libtpu: 0.0.40
codegen_flags: <defaults>
</compile_context>

<pallas_src>
import functools

import jax
import jax.numpy as jnp
from jax.experimental import pallas as pl
from jax.experimental.pallas import tpu as pltpu


_VMEM_LIMIT = 48 * 1024 * 1024    # keep within v7x's 64 MiB physical VMEM
_TILE_BUDGET = 40 * 1024 * 1024   # budget used when sizing tiles (double-buffered)


def _round_up(x: int, m: int) -> int:
    return ((x + m - 1) // m) * m


def _fit_tile(t: int, dim: int, align: int) -> int:
    """Largest legal tile <= dim: either the full dim, or an `align` multiple."""
    if dim <= t:
        return dim                      # whole dim in one block (always legal)
    t = _round_up(t, align)
    return max(align, min(t, (dim // align) * align))


# --------------------------------------------------------------------------
# Path A: weight-resident, full-K, 1-D grid over batch tiles.
# --------------------------------------------------------------------------
def _linear_resident_kernel(x_ref, wt_ref, b_ref, o_ref):
    """x_ref: (tm, E)  wt_ref: (E, O)  b_ref: (1, O)  o_ref: (tm, O)."""
    acc = jnp.dot(x_ref[...], wt_ref[...], preferred_element_type=jnp.float32)
    o_ref[...] = (acc + b_ref[...].astype(jnp.float32)).astype(o_ref.dtype)


# --------------------------------------------------------------------------
# Path B: tiled reduction with an f32 VMEM accumulator (large E and/or O).
# --------------------------------------------------------------------------
def _linear_tiled_kernel(x_ref, wt_ref, b_ref, o_ref, acc_ref):
    """x_ref: (tm, tk)  wt_ref: (tk, tn)  b_ref: (1, tn)  o_ref: (tm, tn)."""
    k = pl.program_id(2)

    @pl.when(k == 0)
    def _():
        # Fold the bias into the accumulator init; finalize becomes cast+store.
        acc_ref[...] = jnp.broadcast_to(
            b_ref[...].astype(jnp.float32), acc_ref.shape)

    acc_ref[...] += jnp.dot(x_ref[...], wt_ref[...],
                            preferred_element_type=jnp.float32)

    @pl.when(k == pl.num_programs(2) - 1)
    def _():
        o_ref[...] = acc_ref[...].astype(o_ref.dtype)


@functools.partial(
    jax.jit,
    static_argnames=("compute_dtype", "tm", "tn", "tk", "force_tiled"))
def probing_classifier_forward(x, weight, bias, *, compute_dtype=None,
                               tm=512, tn=256, tk=2048, force_tiled=False):
    """y = x @ weight.T + bias   (weight: (O, E) PyTorch layout, bias: (O,))."""
    B, E = x.shape
    O = weight.shape[0]
    out_dtype = x.dtype

    # Optional bf16 compute (review: ~2x HBM bytes saved); accumulation is f32.
    if compute_dtype is not None:
        x = x.astype(compute_dtype)
        weight = weight.astype(compute_dtype)
    cdtype = jnp.dtype(x.dtype)
    isz = cdtype.itemsize
    sub = 16 if isz == 2 else 8          # sublane packing (bf16 packs 16 rows)

    # One-time (E, O) layout + 2-D bias.  For probe-sized W this is trivially
    # cheap and amortized across every batch tile on either path.
    wt = weight.T                         # (E, O)
    b2 = bias.reshape(1, O)

    # ---------------- Path A sizing ----------------
    tm_a = _fit_tile(tm, B, sub)
    # Megacore (v7x): make sure both TensorCores get a batch tile.
    if B >= 256 and pl.cdiv(B, tm_a) < 2:
        tm_a = _fit_tile(pl.cdiv(B, 2), B, sub)

    def _footprint_a(t):
        # conservative: everything double-buffered + f32 (t, O) intermediate.
        return 2 * isz * (t * E + E * O + t * O + O) + 4 * t * O

    while _footprint_a(tm_a) > _TILE_BUDGET and tm_a > sub:
        tm_a = _fit_tile(max(tm_a // 2, sub), B, sub)

    if _footprint_a(tm_a) <= _TILE_BUDGET and not force_tiled:
        grid = (pl.cdiv(B, tm_a),)
        cost = pl.CostEstimate(
            flops=2 * B * E * O,
            transcendentals=0,
            bytes_accessed=(B * E + E * O + B * O) * isz + O * bias.dtype.itemsize,
        )
        return pl.pallas_call(
            _linear_resident_kernel,
            out_shape=jax.ShapeDtypeStruct((B, O), out_dtype),
            grid_spec=pltpu.PrefetchScalarGridSpec(
                num_scalar_prefetch=0,
                grid=grid,
                in_specs=[
                    # x tile streams over batch tiles.
                    pl.BlockSpec((tm_a, E), lambda i: (i, 0)),
                    # weight + bias: constant block index -> DMA'd once, VMEM-resident.
                    pl.BlockSpec((E, O), lambda i: (0, 0)),
                    pl.BlockSpec((1, O), lambda i: (0, 0)),
                ],
                out_specs=pl.BlockSpec((tm_a, O), lambda i: (i, 0)),
            ),
            compiler_params=pltpu.CompilerParams(
                dimension_semantics=("parallel",),
                vmem_limit_bytes=_VMEM_LIMIT,
            ),
            cost_estimate=cost,
        )(x, wt, b2)

    # ---------------- Path B: tiled reduction ----------------
    tm_b = _fit_tile(tm, B, sub)
    tn_b = _fit_tile(tn, O, 128)
    tk_b = _fit_tile(tk, E, 128)

    # Only the contraction dim needs zero padding (both operands) for
    # correctness; ragged B / O are handled by cdiv grids + masked partial
    # blocks, so no extra HBM passes there.
    Ep = _round_up(E, tk_b)
    xp = x if Ep == E else jnp.pad(x, ((0, 0), (0, Ep - E)))
    wtp = wt if Ep == E else jnp.pad(wt, ((0, Ep - E), (0, 0)))

    grid = (pl.cdiv(B, tm_b), pl.cdiv(O, tn_b), Ep // tk_b)

    cost = pl.CostEstimate(
        flops=2 * B * Ep * O,
        transcendentals=0,
        bytes_accessed=(B * Ep * isz                 # x stream
                        + Ep * O * isz * grid[0]     # W re-read per batch tile
                        + B * O * isz
                        + O * bias.dtype.itemsize),
    )

    return pl.pallas_call(
        _linear_tiled_kernel,
        out_shape=jax.ShapeDtypeStruct((B, O), out_dtype),
        grid_spec=pltpu.PrefetchScalarGridSpec(
            num_scalar_prefetch=0,
            grid=grid,
            in_specs=[
                pl.BlockSpec((tm_b, tk_b), lambda i, j, k: (i, k)),
                pl.BlockSpec((tk_b, tn_b), lambda i, j, k: (k, j)),
                pl.BlockSpec((1, tn_b), lambda i, j, k: (0, j)),
            ],
            out_specs=pl.BlockSpec((tm_b, tn_b), lambda i, j, k: (i, j)),
            scratch_shapes=[pltpu.VMEM((tm_b, tn_b), jnp.float32)],
        ),
        compiler_params=pltpu.CompilerParams(
            dimension_semantics=("parallel", "parallel", "arbitrary"),
            vmem_limit_bytes=_VMEM_LIMIT,
        ),
        cost_estimate=cost,
    )(xp, wtp, b2)


def init_params(key, embed_dim, output_dim, dtype=jnp.float32):
    """Deterministic synthetic init (PyTorch-style uniform bound)."""
    kw, kb = jax.random.split(key)
    bound = 1.0 / (embed_dim ** 0.5)
    weight = jax.random.uniform(kw, (output_dim, embed_dim), dtype, -bound, bound)
    bias = jax.random.uniform(kb, (output_dim,), dtype, -bound, bound)
    return weight, bias


if __name__ == "__main__":
    embed_dim = 64
    output_dim = 16
    batch = 8

    key = jax.random.PRNGKey(0)
    kx, kp = jax.random.split(key)
    x = jax.random.normal(kx, (batch, embed_dim), jnp.float32)
    weight, bias = init_params(kp, embed_dim, output_dim)

    y_ref = x @ weight.T + bias

    # Fast path: weight-resident, full-K, 1-D grid over batch tiles.
    y = probing_classifier_forward(x, weight, bias)
    y = jax.block_until_ready(y)
    assert y.shape == (batch, output_dim)
    assert jnp.allclose(y, y_ref, atol=1e-5, rtol=1e-5)

    # Fallback path (tiled-K accumulator) exercised for coverage.
    y2 = probing_classifier_forward(x, weight, bias, force_tiled=True)
    y2 = jax.block_until_ready(y2)
    assert jnp.allclose(y2, y_ref, atol=1e-5, rtol=1e-5)

    print("KERNEL_OK")
</pallas_src>

<mosaic_0001>
module attributes {stable_mosaic.version = 11 : i64} {
  func.func @_linear_resident_kernel(%arg0: i32, %arg1: memref<8x64xf32, #tpu.memory_space<vmem>>, %arg2: memref<64x16xf32, #tpu.memory_space<vmem>>, %arg3: memref<1x16xf32, #tpu.memory_space<vmem>>, %arg4: memref<8x16xf32, #tpu.memory_space<vmem>>) attributes {dimension_semantics = [#tpu.dimension_semantics<parallel>], iteration_bounds = array<i64: 1>, scalar_prefetch = 0 : i64, scratch_operands = 0 : i64, tpu.core_type = #tpu.core_type<tc>, window_params = [{transform_indices = @transform_0, window_bounds = array<i64: 8, 64>}, {pipeline_mode = #tpu.pipeline_mode<synchronous>, transform_indices = @transform_1, window_bounds = array<i64: 64, 16>}, {pipeline_mode = #tpu.pipeline_mode<synchronous>, transform_indices = @transform_2, window_bounds = array<i64: 1, 16>}, {transform_indices = @transform_3, window_bounds = array<i64: 8, 16>}]} {
    %c0 = arith.constant 0 : index
    %c0_0 = arith.constant 0 : index
    %0 = vector.load %arg1[%c0, %c0_0] : memref<8x64xf32, #tpu.memory_space<vmem>>, vector<8x64xf32>
    %c0_1 = arith.constant 0 : index
    %c0_2 = arith.constant 0 : index
    %1 = vector.load %arg2[%c0_1, %c0_2] : memref<64x16xf32, #tpu.memory_space<vmem>>, vector<64x16xf32>
    %cst = arith.constant dense<0.000000e+00> : vector<8x16xf32>
    %2 = tpu.matmul %0, %1, %cst {dimension_numbers = #tpu.dot_dimension_numbers<[1], [0], [0], [1], [0, 0, 1, 1], [], []>} : vector<8x64xf32>, vector<64x16xf32>, vector<8x16xf32> -> vector<8x16xf32>
    %c0_3 = arith.constant 0 : index
    %c0_4 = arith.constant 0 : index
    %3 = vector.load %arg3[%c0_3, %c0_4] : memref<1x16xf32, #tpu.memory_space<vmem>>, vector<1x16xf32>
    %4 = vector.broadcast %3 : vector<1x16xf32> to vector<8x16xf32>
    %5 = arith.addf %2, %4 : vector<8x16xf32>
    %c0_5 = arith.constant 0 : index
    %c0_6 = arith.constant 0 : index
    %6 = vector.load %arg4[%c0_5, %c0_6] : memref<8x16xf32, #tpu.memory_space<vmem>>, vector<8x16xf32>
    tpu.vector_store %arg4[%c0_5, %c0_6], %5 {strides = array<i32>} : memref<8x16xf32, #tpu.memory_space<vmem>>, vector<8x16xf32>,
    return
  }
  func.func @transform_0(%arg0: i32) -> (i32, i32) {
    %c0_i32 = arith.constant 0 : i32
    %c0_i32_0 = arith.constant 0 : i32
    return %arg0, %c0_i32 : i32, i32
  }
  func.func @transform_1(%arg0: i32) -> (i32, i32) {
    %c0_i32 = arith.constant 0 : i32
    %c0_i32_0 = arith.constant 0 : i32
    %c0_i32_1 = arith.constant 0 : i32
    return %c0_i32, %c0_i32_0 : i32, i32
  }
  func.func @transform_2(%arg0: i32) -> (i32, i32) {
    %c0_i32 = arith.constant 0 : i32
    %c0_i32_0 = arith.constant 0 : i32
    %c0_i32_1 = arith.constant 0 : i32
    return %c0_i32, %c0_i32_0 : i32, i32
  }
  func.func @transform_3(%arg0: i32) -> (i32, i32) {
    %c0_i32 = arith.constant 0 : i32
    %c0_i32_0 = arith.constant 0 : i32
    return %arg0, %c0_i32 : i32, i32
  }
}

</mosaic_0001>

<llo_original>
// kernel: probing_classifier_forward.1
$region0: #{probing_classifier_forward.1}
  #allocation0 [shape = 'u32[]', space=smem, size = 0x4, offset = 0x4, fixed_abs, tag = 'smem constant byte address 0x4 - core index']
  #allocation1 [shape = 'u32[72,128]{1,0:T(1,128)}', space=vmem, size = 0x9000, scoped, tag = 'internal scratch']
  %s0 = inlined_call_operand.vmem [shape: f32[8,64], index: 0, kind: input, shape index: {}]
  %s1 = inlined_call_operand.vmem [shape: f32[64,16], index: 1, kind: input, shape index: {}]
  %s2 = inlined_call_operand.vmem [shape: f32[1,16], index: 2, kind: input, shape index: {}]
  %s3 = inlined_call_operand.hbm [shape: f32[8,16], index: 3, kind: output, shape index: {}]
  %s4 = sld [smem:[#allocation0]]
  $region22: #{probing_classifier_forward.1} parent=0
    _
  %s6 = ssub.s32 1, %s4
  %s7 = scalar_select 0, %s6, %s4
  $region1: #{probing_classifier_forward.1} parent=0
    #allocation2 [shape = 'u8[4096]{0}', space=vmem, size = 0x1000, scoped, tag = 'output window, operand 0, single buffered']
    #allocation3 [shape = 's32[1]{0}', space=sflag, size = 0x4, scoped, tag = 'scoped memory for probing_classifier_forward.1']
    %8 = vsyncpa [#allocation3], 0
    // Predicated region
    $region2: #{probing_classifier_forward.1} parent=1 // pred_check
      _
    $region3: #{probing_classifier_forward.1} parent=1 // pred_check_branch
      %10 = sbr.rel (0) target = $region5
    $region4: #{probing_classifier_forward.1} parent=1 // pred_region
      _
    $region5: #{probing_classifier_forward.1} parent=1 // pred_fallthru
      _
    // Predicated region
    $region6: #{probing_classifier_forward.1} parent=1 // pred_check
      _
    $region7: #{probing_classifier_forward.1} parent=1 // pred_check_branch
      %12 = sbr.rel (0) target = $region9
    $region8: #{probing_classifier_forward.1} parent=1 // pred_region
      _
    $region9: #{probing_classifier_forward.1} parent=1 // pred_fallthru
      _
    // Predicated region
    $region10: #{probing_classifier_forward.1} parent=1 // pred_check
      _
    $region11: #{probing_classifier_forward.1} parent=1 // pred_check_branch
      %14 = sbr.rel (0) target = $region13
    $region12: #{probing_classifier_forward.1} parent=1 // pred_region
      _
    $region13: #{probing_classifier_forward.1} parent=1 // pred_fallthru
      _
    %v15 = vld [vmem:[%s0] sm:$0xff]
    %v16 = vld [vmem:[%s1] sm:$0xff]
    %v17 = vld [vmem:[%s1 + $0x8] sm:$0xff]
    %v18 = vld [vmem:[%s1 + $0x10] sm:$0xff]
    %v19 = vld [vmem:[%s1 + $0x18] sm:$0xff]
    %v20 = vld [vmem:[%s1 + $0x20] sm:$0xff]
    %v21 = vld [vmem:[%s1 + $0x28] sm:$0xff]
    %v22 = vld [vmem:[%s1 + $0x30] sm:$0xff]
    %v23 = vld [vmem:[%s1 + $0x38] sm:$0xff]
    %v24 = vld [vmem:[%s2] sm:$0x1]
    %v26 = vperm.slane %v24, 0
    %vm28 = vcmask 523264
    %v30 = vsel %vm28, %v15, 0
    %32 = vmatpush.msra.mxu0 0.0
    %33 = vmatpush.msra.mxu0 0.0
    %34 = vmatpush.msra.mxu0 0.0
    %35 = vmatpush.msra.mxu0 0.0
    %36 = vmatpush.msra.mxu0 0.0
    %37 = vmatpush.msra.mxu0 0.0
    %38 = vmatpush.msra.mxu0 0.0
    %39 = vmatpush.msra.mxu0 0.0
    %40 = vmatpush.msra.mxu0 %v23
    %41 = vmatpush.msra.mxu0 %v22
    %42 = vmatpush.msra.mxu0 %v21
    %43 = vmatpush.msra.mxu0 %v20
    %44 = vmatpush.msra.mxu0 %v19
    %45 = vmatpush.msra.mxu0 %v18
    %46 = vmatpush.msra.mxu0 %v17
    %47 = vmatpush.msra.mxu0 %v16
    %48 = vmatmul.f32.gmra.mxu0 %v30
    %v49 = vpop.f32.mrf.mxu0
    %v50 = vadd.f32 %v26, %v49
    %51 = vdwg.mxu0
    %vm52 = vcmask 130048
    %53 = vst.msk [vmem:[#allocation2] sm:$0xff] %vm52, %v50
    // Predicated region
    $region14: #{probing_classifier_forward.1} parent=1 // pred_check
      _
    $region15: #{probing_classifier_forward.1} parent=1 // pred_check_branch
      %55 = sbr.rel (0) target = $region17
    $region16: #{probing_classifier_forward.1} parent=1 // pred_region
      %57 = vsyncadd [#allocation3], 0
      %s59 = sshll.u32 [#allocation2], 4
      %s60 = int_to_ptr.vmem [resolvable:$true] %s59
      %s61 = sshll.u32 %s3, 4
      %s62 = int_to_ptr.hbm [resolvable:$true] %s61
      %64 = dma.vmem_to_hbm [thread:$0]  %s60, 128, %s62, [#allocation3]
    $region17: #{probing_classifier_forward.1} parent=1 // pred_fallthru
      _
    // Predicated region
    $region18: #{probing_classifier_forward.1} parent=1 // pred_check
      _
    $region19: #{probing_classifier_forward.1} parent=1 // pred_check_branch
      %66 = sbr.rel (0) target = $region21
    $region20: #{probing_classifier_forward.1} parent=1 // pred_region
      %68 = dma.done [#allocation3], 128
    $region21: #{probing_classifier_forward.1} parent=1 // pred_fallthru
      _
    %69 = vsyncpa [#allocation3], 1

</llo_original>
